<compile_context>
chip_gen: v5e
topology: v5e:2x2
jax: 0.10.0
libtpu: 0.0.40
codegen_flags: <defaults>
</compile_context>

<pallas_src>
import jax
import jax.numpy as jnp
from jax.experimental import pallas as pl
from jax.experimental.pallas import tpu as pltpu

INPUT_DIM = 768
HIDDEN_DIM = 256
OUTPUT_DIM = 2
OUT_PAD = 128            # lane-pad fc2 output so the last dim is a full vreg lane width
MAX_BATCH_TILE = 512     # <=512 keeps >=2 shardable steps for mid-size batches (v7x);
                         # v5e/v6e may raise this to 1024-2048 for big batches.
NEG_BIAS = -1e30         # "minus infinity" bias for pad lanes (finite -> no inf-inf NaN)


def _round_up(n, m):
    return ((n + m - 1) // m) * m


def _mlp_kernel(x_ref, w1_ref, b1_ref, w2_ref, b2_ref, o_ref):
    # fc1: bf16 (TB, IN) @ bf16 (IN, HID) on the MXU, f32 accumulate; bias/ReLU in f32.
    h = jnp.dot(x_ref[...], w1_ref[...], preferred_element_type=jnp.float32) + b1_ref[...]
    h = jnp.maximum(h, 0.0)
    # fc2 on padded output lanes: bf16 (TB, HID) @ bf16 (HID, OUT_PAD), f32 accumulate.
    # Pad lanes: W2 columns are zero and the bias is -1e30, so exp() -> 0 below
    # without any explicit in-kernel masking.
    logits = jnp.dot(h.astype(jnp.bfloat16), w2_ref[...],
                     preferred_element_type=jnp.float32) + b2_ref[...]
    # Numerically stable softmax over dim=1, fully in f32.
    # Exact reciprocal (division): off the critical path, keeps row sums == 1 to
    # f32 precision (the approx EUP reciprocal violated the sum-to-1 tolerance).
    m = jnp.max(logits, axis=1, keepdims=True)
    e = jnp.exp(logits - m)
    s = jnp.sum(e, axis=1, keepdims=True)
    o_ref[...] = (e / s).astype(o_ref.dtype)


def prepare_params(w1, b1, w2, b2):
    """Pad / reshape / cast parameters once (hoisted out of the per-call hot path).

    w1: (INPUT_DIM, HIDDEN_DIM), b1: (HIDDEN_DIM,)
    w2: (HIDDEN_DIM, OUTPUT_DIM), b2: (OUTPUT_DIM,)

    Matmul operands (W1, padded W2) are bf16; biases stay f32 (added to the f32
    MXU accumulator inside the kernel).
    """
    w1_p = jnp.asarray(w1, jnp.float32).astype(jnp.bfloat16)
    b1_p = jnp.asarray(b1, jnp.float32).reshape(1, HIDDEN_DIM)
    w2_p = jnp.zeros((HIDDEN_DIM, OUT_PAD), jnp.float32).at[:, :OUTPUT_DIM].set(
        jnp.asarray(w2, jnp.float32)).astype(jnp.bfloat16)
    # Bake the pad-lane mask into the bias: pad lanes get a huge negative bias.
    b2_p = jnp.full((1, OUT_PAD), NEG_BIAS, jnp.float32).at[0, :OUTPUT_DIM].set(
        jnp.asarray(b2, jnp.float32))
    return w1_p, b1_p, w2_p, b2_p


def mlp_classifier_forward(x, w1, b1_p, w2_p, b2_p, *, max_batch_tile=MAX_BATCH_TILE):
    """x: (B, INPUT_DIM). Params must come from prepare_params().
    Returns softmax probabilities of shape (B, OUTPUT_DIM) in bfloat16."""
    B = x.shape[0]
    assert x.shape[1] == INPUT_DIM

    # bf16 MXU operand; halves the dominant x HBM read traffic.
    x = x.astype(jnp.bfloat16)

    # Batch tile: big enough to feed the MXU / amortize the ~0.35us per-step cost,
    # but split so there are >=2 grid steps whenever B allows it (dual-TC sharding
    # on v7x via "parallel" semantics; harmless elsewhere).
    tb = max(8, min(max_batch_tile, _round_up(pl.cdiv(B, 2), 8)))
    grid = (pl.cdiv(B, tb),)
    # No wrapper-side jnp.pad of x: the trailing partial block reads/writes are
    # handled by Pallas.  Its garbage rows are row-wise independent (matmul +
    # per-row softmax) and never reach the caller.

    out_padded = pl.pallas_call(
        _mlp_kernel,
        out_shape=jax.ShapeDtypeStruct((B, OUT_PAD), jnp.bfloat16),
        grid_spec=pltpu.PrefetchScalarGridSpec(
            num_scalar_prefetch=0,
            grid=grid,
            in_specs=[
                pl.BlockSpec((tb, INPUT_DIM), lambda i: (i, 0)),          # x tile (bf16)
                pl.BlockSpec((INPUT_DIM, HIDDEN_DIM), lambda i: (0, 0)),  # W1 (resident, bf16)
                pl.BlockSpec((1, HIDDEN_DIM), lambda i: (0, 0)),          # b1 (f32)
                pl.BlockSpec((HIDDEN_DIM, OUT_PAD), lambda i: (0, 0)),    # W2 (padded, bf16)
                pl.BlockSpec((1, OUT_PAD), lambda i: (0, 0)),             # b2 (pad-masked, f32)
            ],
            out_specs=pl.BlockSpec((tb, OUT_PAD), lambda i: (i, 0)),
        ),
        compiler_params=pltpu.CompilerParams(
            dimension_semantics=("parallel",),
            vmem_limit_bytes=32 * 1024 * 1024,   # headroom for larger tiles on v5e/v6e
        ),
    )(x, w1, b1_p, w2_p, b2_p)

    # TODO(synk): hand the padded (B, OUT_PAD) bf16 slab to the consumer directly
    # when possible; the slice below is an extra XLA copy after the pallas_call.
    return out_padded[:, :OUTPUT_DIM]


def _init_params(key):
    """Deterministic init mimicking nn.Linear's U(-1/sqrt(fan_in), 1/sqrt(fan_in))."""
    k1, k2, k3, k4 = jax.random.split(key, 4)
    bound1 = 1.0 / (INPUT_DIM ** 0.5)
    bound2 = 1.0 / (HIDDEN_DIM ** 0.5)
    # Stored as (in_features, out_features) so the kernel does x @ W.
    w1 = jax.random.uniform(k1, (INPUT_DIM, HIDDEN_DIM), jnp.float32, -bound1, bound1)
    b1 = jax.random.uniform(k2, (HIDDEN_DIM,), jnp.float32, -bound1, bound1)
    w2 = jax.random.uniform(k3, (HIDDEN_DIM, OUTPUT_DIM), jnp.float32, -bound2, bound2)
    b2 = jax.random.uniform(k4, (OUTPUT_DIM,), jnp.float32, -bound2, bound2)
    return w1, b1, w2, b2


def _reference(x, w1, b1, w2, b2):
    h = jnp.maximum(x @ w1 + b1, 0.0)
    logits = h @ w2 + b2
    return jax.nn.softmax(logits, axis=1)


if __name__ == "__main__":
    key = jax.random.PRNGKey(0)
    k_params, k_x1, k_x2 = jax.random.split(key, 3)
    w1, b1, w2, b2 = _init_params(k_params)

    # Parameter padding / casting done once, outside the forward path.
    w1_p, b1_p, w2_p, b2_p = prepare_params(w1, b1, w2, b2)

    # bf16 operands + bf16 output slab -> compare against the f32 reference with
    # relaxed (but still meaningful) tolerances.
    ATOL = 2e-2

    # --- Small-batch run (matches the module's typical inference shape) ---
    B = 2
    x = jax.random.normal(k_x1, (B, INPUT_DIM), jnp.float32)
    out = mlp_classifier_forward(x, w1_p, b1_p, w2_p, b2_p)
    out = jax.block_until_ready(out)

    ref = _reference(x, w1, b1, w2, b2)
    assert out.shape == (B, OUTPUT_DIM), out.shape
    out_f32 = out.astype(jnp.float32)
    assert jnp.allclose(out_f32, ref, atol=ATOL, rtol=ATOL), (out_f32, ref)
    assert jnp.allclose(jnp.sum(out_f32, axis=1), 1.0, atol=1e-2)

    # --- Multi-tile run (exercises partial trailing block + multi-step parallel grid) ---
    B2 = 13
    x2 = jax.random.normal(k_x2, (B2, INPUT_DIM), jnp.float32)
    out2 = mlp_classifier_forward(x2, w1_p, b1_p, w2_p, b2_p, max_batch_tile=8)
    out2 = jax.block_until_ready(out2)
    ref2 = _reference(x2, w1, b1, w2, b2)
    assert out2.shape == (B2, OUTPUT_DIM), out2.shape
    out2_f32 = out2.astype(jnp.float32)
    assert jnp.allclose(out2_f32, ref2, atol=ATOL, rtol=ATOL), (out2_f32, ref2)
    assert jnp.allclose(jnp.sum(out2_f32, axis=1), 1.0, atol=1e-2)

    print("KERNEL_OK")
</pallas_src>

<mosaic_0001>
module attributes {stable_mosaic.version = 11 : i64} {
  func.func @_mlp_kernel(%arg0: i32, %arg1: memref<8x768xbf16, #tpu.memory_space<vmem>>, %arg2: memref<768x256xbf16, #tpu.memory_space<vmem>>, %arg3: memref<1x256xf32, #tpu.memory_space<vmem>>, %arg4: memref<256x128xbf16, #tpu.memory_space<vmem>>, %arg5: memref<1x128xf32, #tpu.memory_space<vmem>>, %arg6: memref<8x128xbf16, #tpu.memory_space<vmem>>) attributes {dimension_semantics = [#tpu.dimension_semantics<parallel>], iteration_bounds = array<i64: 1>, scalar_prefetch = 0 : i64, scratch_operands = 0 : i64, tpu.core_type = #tpu.core_type<tc>, window_params = [{transform_indices = @transform_0, window_bounds = array<i64: 8, 768>}, {pipeline_mode = #tpu.pipeline_mode<synchronous>, transform_indices = @transform_1, window_bounds = array<i64: 768, 256>}, {pipeline_mode = #tpu.pipeline_mode<synchronous>, transform_indices = @transform_2, window_bounds = array<i64: 1, 256>}, {pipeline_mode = #tpu.pipeline_mode<synchronous>, transform_indices = @transform_3, window_bounds = array<i64: 256, 128>}, {pipeline_mode = #tpu.pipeline_mode<synchronous>, transform_indices = @transform_4, window_bounds = array<i64: 1, 128>}, {transform_indices = @transform_5, window_bounds = array<i64: 8, 128>}]} {
    %c0 = arith.constant 0 : index
    %c0_0 = arith.constant 0 : index
    %0 = vector.load %arg1[%c0, %c0_0] : memref<8x768xbf16, #tpu.memory_space<vmem>>, vector<8x768xbf16>
    %c0_1 = arith.constant 0 : index
    %c0_2 = arith.constant 0 : index
    %1 = vector.load %arg2[%c0_1, %c0_2] : memref<768x256xbf16, #tpu.memory_space<vmem>>, vector<768x256xbf16>
    %cst = arith.constant dense<0.000000e+00> : vector<8x256xf32>
    %2 = tpu.matmul %0, %1, %cst {dimension_numbers = #tpu.dot_dimension_numbers<[1], [0], [0], [1], [0, 0, 1, 1], [], []>} : vector<8x768xbf16>, vector<768x256xbf16>, vector<8x256xf32> -> vector<8x256xf32>
    %c0_3 = arith.constant 0 : index
    %c0_4 = arith.constant 0 : index
    %3 = vector.load %arg3[%c0_3, %c0_4] : memref<1x256xf32, #tpu.memory_space<vmem>>, vector<1x256xf32>
    %4 = vector.broadcast %3 : vector<1x256xf32> to vector<8x256xf32>
    %5 = arith.addf %2, %4 : vector<8x256xf32>
    %cst_5 = arith.constant 0.000000e+00 : f32
    %6 = vector.broadcast %cst_5 : f32 to vector<8x256xf32>
    %7 = arith.maximumf %5, %6 : vector<8x256xf32>
    %8 = arith.truncf %7 : vector<8x256xf32> to vector<8x256xbf16>
    %c0_6 = arith.constant 0 : index
    %c0_7 = arith.constant 0 : index
    %9 = vector.load %arg4[%c0_6, %c0_7] : memref<256x128xbf16, #tpu.memory_space<vmem>>, vector<256x128xbf16>
    %cst_8 = arith.constant dense<0.000000e+00> : vector<8x128xf32>
    %10 = tpu.matmul %8, %9, %cst_8 {dimension_numbers = #tpu.dot_dimension_numbers<[1], [0], [0], [1], [0, 0, 1, 1], [], []>} : vector<8x256xbf16>, vector<256x128xbf16>, vector<8x128xf32> -> vector<8x128xf32>
    %c0_9 = arith.constant 0 : index
    %c0_10 = arith.constant 0 : index
    %11 = vector.load %arg5[%c0_9, %c0_10] : memref<1x128xf32, #tpu.memory_space<vmem>>, vector<1x128xf32>
    %12 = vector.broadcast %11 : vector<1x128xf32> to vector<8x128xf32>
    %13 = arith.addf %10, %12 : vector<8x128xf32>
    %cst_11 = arith.constant dense<0xFF800000> : vector<8xf32>
    %14 = vector.multi_reduction <maximumf>, %13, %cst_11 [1] : vector<8x128xf32> to vector<8xf32>
    %15 = vector.shape_cast %14 : vector<8xf32> to vector<8x1xf32>
    %16 = vector.broadcast %15 : vector<8x1xf32> to vector<8x128xf32>
    %17 = arith.subf %13, %16 : vector<8x128xf32>
    %18 = math.exp %17 : vector<8x128xf32>
    %cst_12 = arith.constant dense<0.000000e+00> : vector<8xf32>
    %19 = vector.multi_reduction <add>, %18, %cst_12 [1] : vector<8x128xf32> to vector<8xf32>
    %20 = vector.shape_cast %19 : vector<8xf32> to vector<8x1xf32>
    %21 = vector.broadcast %20 : vector<8x1xf32> to vector<8x128xf32>
    %22 = arith.divf %18, %21 : vector<8x128xf32>
    %23 = arith.truncf %22 : vector<8x128xf32> to vector<8x128xbf16>
    %c0_13 = arith.constant 0 : index
    %c0_14 = arith.constant 0 : index
    %24 = vector.load %arg6[%c0_13, %c0_14] : memref<8x128xbf16, #tpu.memory_space<vmem>>, vector<8x128xbf16>
    tpu.vector_store %arg6[%c0_13, %c0_14], %23 {strides = array<i32>} : memref<8x128xbf16, #tpu.memory_space<vmem>>, vector<8x128xbf16>,
    return
  }
  func.func @transform_0(%arg0: i32) -> (i32, i32) {
    %c0_i32 = arith.constant 0 : i32
    %c0_i32_0 = arith.constant 0 : i32
    return %arg0, %c0_i32 : i32, i32
  }
  func.func @transform_1(%arg0: i32) -> (i32, i32) {
    %c0_i32 = arith.constant 0 : i32
    %c0_i32_0 = arith.constant 0 : i32
    %c0_i32_1 = arith.constant 0 : i32
    return %c0_i32, %c0_i32_0 : i32, i32
  }
  func.func @transform_2(%arg0: i32) -> (i32, i32) {
    %c0_i32 = arith.constant 0 : i32
    %c0_i32_0 = arith.constant 0 : i32
    %c0_i32_1 = arith.constant 0 : i32
    return %c0_i32, %c0_i32_0 : i32, i32
  }
  func.func @transform_3(%arg0: i32) -> (i32, i32) {
    %c0_i32 = arith.constant 0 : i32
    %c0_i32_0 = arith.constant 0 : i32
    %c0_i32_1 = arith.constant 0 : i32
    return %c0_i32, %c0_i32_0 : i32, i32
  }
  func.func @transform_4(%arg0: i32) -> (i32, i32) {
    %c0_i32 = arith.constant 0 : i32
    %c0_i32_0 = arith.constant 0 : i32
    %c0_i32_1 = arith.constant 0 : i32
    return %c0_i32, %c0_i32_0 : i32, i32
  }
  func.func @transform_5(%arg0: i32) -> (i32, i32) {
    %c0_i32 = arith.constant 0 : i32
    %c0_i32_0 = arith.constant 0 : i32
    return %arg0, %c0_i32 : i32, i32
  }
}

</mosaic_0001>

<llo_original>
// kernel: tpu_custom_call.1
$region0: #{tpu_custom_call.1}
  #allocation0 [shape = 'u32[]', space=smem, size = 0x4, offset = 0x4, fixed_abs, tag = 'smem constant byte address 0x4 - core index']
  #allocation1 [shape = 'u32[72,128]{1,0:T(1,128)}', space=vmem, size = 0x9000, scoped, tag = 'internal scratch']
  %s0 = inlined_call_operand.hbm [shape: bf16[2,768], index: 0, kind: input, shape index: {}]
  %s1 = inlined_call_operand.hbm [shape: bf16[768,256], index: 1, kind: input, shape index: {}]
  %s2 = inlined_call_operand.hbm [shape: f32[1,256], index: 2, kind: input, shape index: {}]
  %s3 = inlined_call_operand.hbm [shape: bf16[256,128], index: 3, kind: input, shape index: {}]
  %s4 = inlined_call_operand.vmem [shape: f32[1,128], index: 4, kind: input, shape index: {}]
  %s5 = inlined_call_operand.hbm [shape: bf16[2,128], index: 5, kind: output, shape index: {}]
  %s6 = sld [smem:[#allocation0]]
  $region46: #{tpu_custom_call.1} parent=0
    _
  %s8 = ssub.s32 1, %s6
  %s9 = scalar_select 0, %s8, %s6
  $region1: #{tpu_custom_call.1} parent=0
    #allocation2 [shape = 'u8[12288]{0}', space=vmem, size = 0x3000, scoped, tag = 'input window, operand 0, single buffered']
    #allocation3 [shape = 's32[1]{0}', space=sflag, size = 0x4, scoped, tag = 'scoped memory for tpu_custom_call.1']
    #allocation4 [shape = 's32[1]{0}', space=sflag, size = 0x4, scoped, tag = 'scoped memory for tpu_custom_call.1']
    #allocation5 [shape = 'u8[393216]{0}', space=vmem, size = 0x60000, scoped, tag = 'input window, operand 1, single buffered']
    #allocation6 [shape = 's32[1]{0}', space=sflag, size = 0x4, scoped, tag = 'scoped memory for tpu_custom_call.1']
    #allocation7 [shape = 'u8[1024]{0}', space=vmem, size = 0x400, scoped, tag = 'input window, operand 2, single buffered']
    #allocation8 [shape = 'u8[65536]{0}', space=vmem, size = 0x10000, scoped, tag = 'input window, operand 3, single buffered']
    #allocation9 [shape = 's32[1]{0}', space=sflag, size = 0x4, scoped, tag = 'scoped memory for tpu_custom_call.1']
    #allocation10 [shape = 'u8[2048]{0}', space=vmem, size = 0x800, scoped, tag = 'output window, operand 0, single buffered']
    %10 = vsyncpa [#allocation3], 0
    %11 = vsyncpa [#allocation6], 0
    %12 = vsyncpa [#allocation9], 0
    %13 = vsyncpa [#allocation4], 0
    // Predicated region
    $region2: #{tpu_custom_call.1} parent=1 // pred_check
      _
    $region3: #{tpu_custom_call.1} parent=1 // pred_check_branch
      %15 = sbr.rel (0) target = $region5
    $region4: #{tpu_custom_call.1} parent=1 // pred_region
      %17 = vsyncadd [#allocation3], 288
      %s18 = sshll.u32 %s0, 4
      %s19 = int_to_ptr.hbm [resolvable:$true] %s18
      %s20 = sshll.u32 [#allocation2], 4
      %s21 = int_to_ptr.vmem [resolvable:$true] %s20
      %26 = dma.hbm_to_vmem [thread:$0]  %s19, 96, %s21, [#allocation3], 96, 96, 6
    $region5: #{tpu_custom_call.1} parent=1 // pred_fallthru
      _
    // Predicated region
    $region6: #{tpu_custom_call.1} parent=1 // pred_check
      _
    $region7: #{tpu_custom_call.1} parent=1 // pred_check_branch
      %28 = sbr.rel (0) target = $region9
    $region8: #{tpu_custom_call.1} parent=1 // pred_region
      %30 = vsyncadd [#allocation6], 0
      %s31 = sshll.u32 %s1, 4
      %s32 = int_to_ptr.hbm [resolvable:$true] %s31
      %s33 = sshll.u32 [#allocation5], 4
      %s34 = int_to_ptr.vmem [resolvable:$true] %s33
      %39 = dma.hbm_to_vmem [thread:$0]  %s32, 12288, %s34, [#allocation6], 128, 128, 8
    $region9: #{tpu_custom_call.1} parent=1 // pred_fallthru
      _
    // Predicated region
    $region10: #{tpu_custom_call.1} parent=1 // pred_check
      _
    $region11: #{tpu_custom_call.1} parent=1 // pred_check_branch
      %41 = sbr.rel (0) target = $region13
    $region12: #{tpu_custom_call.1} parent=1 // pred_region
      %43 = vsyncadd [#allocation6], 0
      %s45 = sshll.u32 %s2, 4
      %s46 = int_to_ptr.hbm [resolvable:$true] %s45
      %s47 = sshll.u32 [#allocation7], 4
      %s48 = int_to_ptr.vmem [resolvable:$true] %s47
      %50 = dma.hbm_to_vmem [thread:$0]  %s46, 32, %s48, [#allocation6]
    $region13: #{tpu_custom_call.1} parent=1 // pred_fallthru
      _
    // Predicated region
    $region14: #{tpu_custom_call.1} parent=1 // pred_check
      _
    $region15: #{tpu_custom_call.1} parent=1 // pred_check_branch
      %52 = sbr.rel (0) target = $region17
    $region16: #{tpu_custom_call.1} parent=1 // pred_region
      %54 = vsyncadd [#allocation9], 0
      %s55 = sshll.u32 %s3, 4
      %s56 = int_to_ptr.hbm [resolvable:$true] %s55
      %s57 = sshll.u32 [#allocation8], 4
      %s58 = int_to_ptr.vmem [resolvable:$true] %s57
      %63 = dma.hbm_to_vmem [thread:$0]  %s56, 2048, %s58, [#allocation9], 64, 64, 4
    $region17: #{tpu_custom_call.1} parent=1 // pred_fallthru
      _
    // Predicated region
    $region18: #{tpu_custom_call.1} parent=1 // pred_check
      _
    $region19: #{tpu_custom_call.1} parent=1 // pred_check_branch
      %65 = sbr.rel (0) target = $region21
    $region20: #{tpu_custom_call.1} parent=1 // pred_region
      _
    $region21: #{tpu_custom_call.1} parent=1 // pred_fallthru
      _
    // Predicated region
    $region22: #{tpu_custom_call.1} parent=1 // pred_check
      _
    $region23: #{tpu_custom_call.1} parent=1 // pred_check_branch
      %67 = sbr.rel (0) target = $region25
    $region24: #{tpu_custom_call.1} parent=1 // pred_region
      %69 = dma.done [#allocation3], 384
    $region25: #{tpu_custom_call.1} parent=1 // pred_fallthru
      _
    // Predicated region
    $region26: #{tpu_custom_call.1} parent=1 // pred_check
      _
    $region27: #{tpu_custom_call.1} parent=1 // pred_check_branch
      %71 = sbr.rel (0) target = $region29
    $region28: #{tpu_custom_call.1} parent=1 // pred_region
      %73 = dma.done [#allocation6], 12288
    $region29: #{tpu_custom_call.1} parent=1 // pred_fallthru
      _
    // Predicated region
    $region30: #{tpu_custom_call.1} parent=1 // pred_check
      _
    $region31: #{tpu_custom_call.1} parent=1 // pred_check_branch
      %75 = sbr.rel (0) target = $region33
    $region32: #{tpu_custom_call.1} parent=1 // pred_region
      %77 = dma.done [#allocation6], 32
    $region33: #{tpu_custom_call.1} parent=1 // pred_fallthru
      _
    // Predicated region
    $region34: #{tpu_custom_call.1} parent=1 // pred_check
      _
    $region35: #{tpu_custom_call.1} parent=1 // pred_check_branch
      %79 = sbr.rel (0) target = $region37
    $region36: #{tpu_custom_call.1} parent=1 // pred_region
      %81 = dma.done [#allocation9], 2048
    $region37: #{tpu_custom_call.1} parent=1 // pred_fallthru
      _
    %v82 = vld [vmem:[#allocation2] sm:$0x3f]
    %v83 = vld [vmem:[#allocation2 + $0x6] sm:$0x3f]
    %v84 = vld [vmem:[#allocation2 + $0xc] sm:$0x3f]
    %v85 = vld [vmem:[#allocation2 + $0x12] sm:$0x3f]
    %v86 = vld [vmem:[#allocation5] sm:$0xff]
    %v87 = vld [vmem:[#allocation5 + $0x8] sm:$0xff]
    %v88 = vld [vmem:[#allocation5 + $0x10] sm:$0xff]
    %v89 = vld [vmem:[#allocation5 + $0x18] sm:$0xff]
    %v90 = vld [vmem:[#allocation5 + $0x20] sm:$0xff]
    %v91 = vld [vmem:[#allocation5 + $0x28] sm:$0xff]
    %v92 = vld [vmem:[#allocation5 + $0x30] sm:$0xff]
    %v93 = vld [vmem:[#allocation5 + $0x38] sm:$0xff]
    %v94 = vld [vmem:[#allocation5 + $0x40] sm:$0xff]
    %v95 = vld [vmem:[#allocation5 + $0x48] sm:$0xff]
    %v96 = vld [vmem:[#allocation5 + $0x50] sm:$0xff]
    %v97 = vld [vmem:[#allocation5 + $0x58] sm:$0xff]
    %v98 = vld [vmem:[#allocation5 + $0x60] sm:$0xff]
    %v99 = vld [vmem:[#allocation5 + $0x68] sm:$0xff]
    %v100 = vld [vmem:[#allocation5 + $0x70] sm:$0xff]
    %v101 = vld [vmem:[#allocation5 + $0x78] sm:$0xff]
    %v102 = vld [vmem:[#allocation5 + $0x80] sm:$0xff]
    %v103 = vld [vmem:[#allocation5 + $0x88] sm:$0xff]
    %v104 = vld [vmem:[#allocation5 + $0x90] sm:$0xff]
    %v105 = vld [vmem:[#allocation5 + $0x98] sm:$0xff]
    %v106 = vld [vmem:[#allocation5 + $0xa0] sm:$0xff]
    %v107 = vld [vmem:[#allocation5 + $0xa8] sm:$0xff]
    %v108 = vld [vmem:[#allocation5 + $0xb0] sm:$0xff]
    %v109 = vld [vmem:[#allocation5 + $0xb8] sm:$0xff]
    %v110 = vld [vmem:[#allocation5 + $0xc0] sm:$0xff]
    %v111 = vld [vmem:[#allocation5 + $0xc8] sm:$0xff]
    %v112 = vld [vmem:[#allocation5 + $0xd0] sm:$0xff]
    %v113 = vld [vmem:[#allocation5 + $0xd8] sm:$0xff]
    %v114 = vld [vmem:[#allocation5 + $0xe0] sm:$0xff]
    %v115 = vld [vmem:[#allocation5 + $0xe8] sm:$0xff]
    %v116 = vld [vmem:[#allocation5 + $0xf0] sm:$0xff]
    %v117 = vld [vmem:[#allocation5 + $0xf8] sm:$0xff]
    %v118 = vld [vmem:[#allocation5 + $0x100] sm:$0xff]
    %v119 = vld [vmem:[#allocation5 + $0x108] sm:$0xff]
    %v120 = vld [vmem:[#allocation5 + $0x110] sm:$0xff]
    %v121 = vld [vmem:[#allocation5 + $0x118] sm:$0xff]
    %v122 = vld [vmem:[#allocation5 + $0x120] sm:$0xff]
    %v123 = vld [vmem:[#allocation5 + $0x128] sm:$0xff]
    %v124 = vld [vmem:[#allocation5 + $0x130] sm:$0xff]
    %v125 = vld [vmem:[#allocation5 + $0x138] sm:$0xff]
    %v126 = vld [vmem:[#allocation5 + $0x140] sm:$0xff]
    %v127 = vld [vmem:[#allocation5 + $0x148] sm:$0xff]
    %v128 = vld [vmem:[#allocation5 + $0x150] sm:$0xff]
    %v129 = vld [vmem:[#allocation5 + $0x158] sm:$0xff]
    %v130 = vld [vmem:[#allocation5 + $0x160] sm:$0xff]
    %v131 = vld [vmem:[#allocation5 + $0x168] sm:$0xff]
    %v132 = vld [vmem:[#allocation5 + $0x170] sm:$0xff]
    %v133 = vld [vmem:[#allocation5 + $0x178] sm:$0xff]
    %v134 = vld [vmem:[#allocation5 + $0x180] sm:$0xff]
    %v135 = vld [vmem:[#allocation5 + $0x188] sm:$0xff]
    %v136 = vld [vmem:[#allocation5 + $0x190] sm:$0xff]
    %v137 = vld [vmem:[#allocation5 + $0x198] sm:$0xff]
    %v138 = vld [vmem:[#allocation5 + $0x1a0] sm:$0xff]
    %v139 = vld [vmem:[#allocation5 + $0x1a8] sm:$0xff]
    %v140 = vld [vmem:[#allocation5 + $0x1b0] sm:$0xff]
    %v141 = vld [vmem:[#allocation5 + $0x1b8] sm:$0xff]
    %v142 = vld [vmem:[#allocation5 + $0x1c0] sm:$0xff]
    %v143 = vld [vmem:[#allocation5 + $0x1c8] sm:$0xff]
    %v144 = vld [vmem:[#allocation5 + $0x1d0] sm:$0xff]
    %v145 = vld [vmem:[#allocation5 + $0x1d8] sm:$0xff]
    %v146 = vld [vmem:[#allocation5 + $0x1e0] sm:$0xff]
    %v147 = vld [vmem:[#allocation5 + $0x1e8] sm:$0xff]
    %v148 = vld [vmem:[#allocation5 + $0x1f0] sm:$0xff]
    %v149 = vld [vmem:[#allocation5 + $0x1f8] sm:$0xff]
    %v150 = vld [vmem:[#allocation5 + $0x200] sm:$0xff]
    %v151 = vld [vmem:[#allocation5 + $0x208] sm:$0xff]
    %v152 = vld [vmem:[#allocation5 + $0x210] sm:$0xff]
    %v153 = vld [vmem:[#allocation5 + $0x218] sm:$0xff]
    %v154 = vld [vmem:[#allocation5 + $0x220] sm:$0xff]
    %v155 = vld [vmem:[#allocation5 + $0x228] sm:$0xff]
    %v156 = vld [vmem:[#allocation5 + $0x230] sm:$0xff]
    %v157 = vld [vmem:[#allocation5 + $0x238] sm:$0xff]
    %v158 = vld [vmem:[#allocation5 + $0x240] sm:$0xff]
    %v159 = vld [vmem:[#allocation5 + $0x248] sm:$0xff]
    %v160 = vld [vmem:[#allocation5 + $0x250] sm:$0xff]
    %v161 = vld [vmem:[#allocation5 + $0x258] sm:$0xff]
    %v162 = vld [vmem:[#allocation5 + $0x260] sm:$0xff]
    %v163 = vld [vmem:[#allocation5 + $0x268] sm:$0xff]
    %v164 = vld [vmem:[#allocation5 + $0x270] sm:$0xff]
    %v165 = vld [vmem:[#allocation5 + $0x278] sm:$0xff]
    %v166 = vld [vmem:[#allocation5 + $0x280] sm:$0xff]
    %v167 = vld [vmem:[#allocation5 + $0x288] sm:$0xff]
    %v168 = vld [vmem:[#allocation5 + $0x290] sm:$0xff]
    %v169 = vld [vmem:[#allocation5 + $0x298] sm:$0xff]
    %v170 = vld [vmem:[#allocation5 + $0x2a0] sm:$0xff]
    %v171 = vld [vmem:[#allocation5 + $0x2a8] sm:$0xff]
    %v172 = vld [vmem:[#allocation5 + $0x2b0] sm:$0xff]
    %v173 = vld [vmem:[#allocation5 + $0x2b8] sm:$0xff]
    %v174 = vld [vmem:[#allocation5 + $0x2c0] sm:$0xff]
    %v175 = vld [vmem:[#allocation5 + $0x2c8] sm:$0xff]
    %v176 = vld [vmem:[#allocation5 + $0x2d0] sm:$0xff]
    %v177 = vld [vmem:[#allocation5 + $0x2d8] sm:$0xff]
    %v178 = vld [vmem:[#allocation5 + $0x2e0] sm:$0xff]
    %v179 = vld [vmem:[#allocation5 + $0x2e8] sm:$0xff]
    %v180 = vld [vmem:[#allocation5 + $0x2f0] sm:$0xff]
    %v181 = vld [vmem:[#allocation5 + $0x2f8] sm:$0xff]
    %v182 = vld [vmem:[#allocation7] sm:$0x3]
    %v184 = vperm.slane %v182, 0
    %v185 = vperm.slane %v182, 1
    %189 = vst [vmem:[#allocation1] ss:$9 sm:$0xff] %v82
    %s191 = scalar_lea.vmem [#allocation1], 1
    %192 = vst [vmem:[%s191] ss:$9 sm:$0xff] %v83
    %s194 = scalar_lea.vmem [#allocation1], 2
    %195 = vst [vmem:[%s194] ss:$9 sm:$0xff] %v84
    %s197 = scalar_lea.vmem [#allocation1], 3
    %198 = vst [vmem:[%s197] ss:$9 sm:$0xff] %v85
    %v199 = vld [vmem:[#allocation1] sm:$0xff]
    %v200 = vld [vmem:[#allocation1 + $0x9] sm:$0xff]
    %v201 = vld [vmem:[#allocation1 + $0x12] sm:$0xff]
    %v202 = vld [vmem:[#allocation1 + $0x1b] sm:$0xff]
    %v203 = vld [vmem:[#allocation1 + $0x24] sm:$0xff]
    %v204 = vld [vmem:[#allocation1 + $0x2d] sm:$0xff]
    %v307 = vunpack.c.l.b16 %v86
    %v308 = vunpack.c.h.b16 %v86
    %v309 = vunpack.c.l.b16 %v87
    %v310 = vunpack.c.h.b16 %v87
    %v311 = vunpack.c.l.b16 %v88
    %v312 = vunpack.c.h.b16 %v88
    %v313 = vunpack.c.l.b16 %v89
    %v314 = vunpack.c.h.b16 %v89
    %v315 = vunpack.c.l.b16 %v90
    %v316 = vunpack.c.h.b16 %v90
    %v317 = vunpack.c.l.b16 %v91
    %v318 = vunpack.c.h.b16 %v91
    %v319 = vunpack.c.l.b16 %v92
    %v320 = vunpack.c.h.b16 %v92
    %v321 = vunpack.c.l.b16 %v93
    %v322 = vunpack.c.h.b16 %v93
    %v323 = vunpack.c.l.b16 %v94
    %v324 = vunpack.c.h.b16 %v94
    %v325 = vunpack.c.l.b16 %v95
    %v326 = vunpack.c.h.b16 %v95
    %v327 = vunpack.c.l.b16 %v96
    %v328 = vunpack.c.h.b16 %v96
    %v329 = vunpack.c.l.b16 %v97
    %v330 = vunpack.c.h.b16 %v97
    %v331 = vunpack.c.l.b16 %v98
    %v332 = vunpack.c.h.b16 %v98
    %v333 = vunpack.c.l.b16 %v99
    %v334 = vunpack.c.h.b16 %v99
    %v335 = vunpack.c.l.b16 %v100
    %v336 = vunpack.c.h.b16 %v100
    %v337 = vunpack.c.l.b16 %v101
    %v338 = vunpack.c.h.b16 %v101
    %v339 = vunpack.c.l.b16 %v102
    %v340 = vunpack.c.h.b16 %v102
    %v341 = vunpack.c.l.b16 %v103
    %v342 = vunpack.c.h.b16 %v103
    %v343 = vunpack.c.l.b16 %v104
    %v344 = vunpack.c.h.b16 %v104
    %v345 = vunpack.c.l.b16 %v105
    %v346 = vunpack.c.h.b16 %v105
    %v347 = vunpack.c.l.b16 %v106
    %v348 = vunpack.c.h.b16 %v106
    %v349 = vunpack.c.l.b16 %v107
    %v350 = vunpack.c.h.b16 %v107
    %v351 = vunpack.c.l.b16 %v108
    %v352 = vunpack.c.h.b16 %v108
    %v353 = vunpack.c.l.b16 %v109
    %v354 = vunpack.c.h.b16 %v109
    %v355 = vunpack.c.l.b16 %v110
    %v356 = vunpack.c.h.b16 %v110
    %v357 = vunpack.c.l.b16 %v111
    %v358 = vunpack.c.h.b16 %v111
    %v359 = vunpack.c.l.b16 %v112
    %v360 = vunpack.c.h.b16 %v112
    %v361 = vunpack.c.l.b16 %v113
    %v362 = vunpack.c.h.b16 %v113
    %v363 = vunpack.c.l.b16 %v114
    %v364 = vunpack.c.h.b16 %v114
    %v365 = vunpack.c.l.b16 %v115
    %v366 = vunpack.c.h.b16 %v115
    %v367 = vunpack.c.l.b16 %v116
    %v368 = vunpack.c.h.b16 %v116
    %v369 = vunpack.c.l.b16 %v117
    %v370 = vunpack.c.h.b16 %v117
    %v371 = vunpack.c.l.b16 %v118
    %v372 = vunpack.c.h.b16 %v118
    %v373 = vunpack.c.l.b16 %v119
    %v374 = vunpack.c.h.b16 %v119
    %v375 = vunpack.c.l.b16 %v120
    %v376 = vunpack.c.h.b16 %v120
    %v377 = vunpack.c.l.b16 %v121
    %v378 = vunpack.c.h.b16 %v121
    %v379 = vunpack.c.l.b16 %v122
    %v380 = vunpack.c.h.b16 %v122
    %v381 = vunpack.c.l.b16 %v123
    %v382 = vunpack.c.h.b16 %v123
    %v383 = vunpack.c.l.b16 %v124
    %v384 = vunpack.c.h.b16 %v124
    %v385 = vunpack.c.l.b16 %v125
    %v386 = vunpack.c.h.b16 %v125
    %v387 = vunpack.c.l.b16 %v126
    %v388 = vunpack.c.h.b16 %v126
    %v389 = vunpack.c.l.b16 %v127
    %v390 = vunpack.c.h.b16 %v127
    %v391 = vunpack.c.l.b16 %v128
    %v392 = vunpack.c.h.b16 %v128
    %v393 = vunpack.c.l.b16 %v129
    %v394 = vunpack.c.h.b16 %v129
    %v395 = vunpack.c.l.b16 %v130
    %v396 = vunpack.c.h.b16 %v130
    %v397 = vunpack.c.l.b16 %v131
    %v398 = vunpack.c.h.b16 %v131
    %v399 = vunpack.c.l.b16 %v132
    %v400 = vunpack.c.h.b16 %v132
    %v401 = vunpack.c.l.b16 %v133
    %v402 = vunpack.c.h.b16 %v133
    %v403 = vunpack.c.l.b16 %v134
    %v404 = vunpack.c.h.b16 %v134
    %v405 = vunpack.c.l.b16 %v135
    %v406 = vunpack.c.h.b16 %v135
    %v407 = vunpack.c.l.b16 %v136
    %v408 = vunpack.c.h.b16 %v136
    %v409 = vunpack.c.l.b16 %v137
    %v410 = vunpack.c.h.b16 %v137
    %v411 = vunpack.c.l.b16 %v138
    %v412 = vunpack.c.h.b16 %v138
    %v413 = vunpack.c.l.b16 %v139
    %v414 = vunpack.c.h.b16 %v139
    %v415 = vunpack.c.l.b16 %v140
    %v416 = vunpack.c.h.b16 %v140
    %v417 = vunpack.c.l.b16 %v141
    %v418 = vunpack.c.h.b16 %v141
    %v419 = vunpack.c.l.b16 %v142
    %v420 = vunpack.c.h.b16 %v142
    %v421 = vunpack.c.l.b16 %v143
    %v422 = vunpack.c.h.b16 %v143
    %v423 = vunpack.c.l.b16 %v144
    %v424 = vunpack.c.h.b16 %v144
    %v425 = vunpack.c.l.b16 %v145
    %v426 = vunpack.c.h.b16 %v145
    %v427 = vunpack.c.l.b16 %v146
    %v428 = vunpack.c.h.b16 %v146
    %v429 = vunpack.c.l.b16 %v147
    %v430 = vunpack.c.h.b16 %v147
    %v431 = vunpack.c.l.b16 %v148
    %v432 = vunpack.c.h.b16 %v148
    %v433 = vunpack.c.l.b16 %v149
    %v434 = vunpack.c.h.b16 %v149
    %v435 = vunpack.c.l.b16 %v150
    %v436 = vunpack.c.h.b16 %v150
    %v437 = vunpack.c.l.b16 %v151
    %v438 = vunpack.c.h.b16 %v151
    %v439 = vunpack.c.l.b16 %v152
    %v440 = vunpack.c.h.b16 %v152
    %v441 = vunpack.c.l.b16 %v153
    %v442 = vunpack.c.h.b16 %v153
    %v443 = vunpack.c.l.b16 %v154
    %v444 = vunpack.c.h.b16 %v154
    %v445 = vunpack.c.l.b16 %v155
    %v446 = vunpack.c.h.b16 %v155
    %v447 = vunpack.c.l.b16 %v156
    %v448 = vunpack.c.h.b16 %v156
    %v449 = vunpack.c.l.b16 %v157
    %v450 = vunpack.c.h.b16 %v157
    %v451 = vunpack.c.l.b16 %v158
    %v452 = vunpack.c.h.b16 %v158
    %v453 = vunpack.c.l.b16 %v159
    %v454 = vunpack.c.h.b16 %v159
    %v455 = vunpack.c.l.b16 %v160
    %v456 = vunpack.c.h.b16 %v160
    %v457 = vunpack.c.l.b16 %v161
    %v458 = vunpack.c.h.b16 %v161
    %v459 = vunpack.c.l.b16 %v162
    %v460 = vunpack.c.h.b16 %v162
    %v461 = vunpack.c.l.b16 %v163
    %v462 = vunpack.c.h.b16 %v163
    %v463 = vunpack.c.l.b16 %v164
    %v464 = vunpack.c.h.b16 %v164
    %v465 = vunpack.c.l.b16 %v165
    %v466 = vunpack.c.h.b16 %v165
    %v467 = vunpack.c.l.b16 %v166
    %v468 = vunpack.c.h.b16 %v166
    %v469 = vunpack.c.l.b16 %v167
    %v470 = vunpack.c.h.b16 %v167
    %v471 = vunpack.c.l.b16 %v168
    %v472 = vunpack.c.h.b16 %v168
    %v473 = vunpack.c.l.b16 %v169
    %v474 = vunpack.c.h.b16 %v169
    %v475 = vunpack.c.l.b16 %v170
    %v476 = vunpack.c.h.b16 %v170
    %v477 = vunpack.c.l.b16 %v171
    %v478 = vunpack.c.h.b16 %v171
    %v479 = vunpack.c.l.b16 %v172
    %v480 = vunpack.c.h.b16 %v172
    %v481 = vunpack.c.l.b16 %v173
    %v482 = vunpack.c.h.b16 %v173
    %v483 = vunpack.c.l.b16 %v174
    %v484 = vunpack.c.h.b16 %v174
    %v485 = vunpack.c.l.b16 %v175
    %v486 = vunpack.c.h.b16 %v175
    %v487 = vunpack.c.l.b16 %v176
    %v488 = vunpack.c.h.b16 %v176
    %v489 = vunpack.c.l.b16 %v177
    %v490 = vunpack.c.h.b16 %v177
    %v491 = vunpack.c.l.b16 %v178
    %v492 = vunpack.c.h.b16 %v178
    %v493 = vunpack.c.l.b16 %v179
    %v494 = vunpack.c.h.b16 %v179
    %v495 = vunpack.c.l.b16 %v180
    %v496 = vunpack.c.h.b16 %v180
    %v497 = vunpack.c.l.b16 %v181
    %v498 = vunpack.c.h.b16 %v181
    %v499 = vpack.c.b16 %v309, %v307
    %v500 = vpack.c.b16 %v310, %v308
    %v501 = vpack.c.b16 %v313, %v311
    %v502 = vpack.c.b16 %v314, %v312
    %v503 = vpack.c.b16 %v317, %v315
    %v504 = vpack.c.b16 %v318, %v316
    %v505 = vpack.c.b16 %v321, %v319
    %v506 = vpack.c.b16 %v322, %v320
    %v507 = vpack.c.b16 %v325, %v323
    %v508 = vpack.c.b16 %v326, %v324
    %v509 = vpack.c.b16 %v329, %v327
    %v510 = vpack.c.b16 %v330, %v328
    %v511 = vpack.c.b16 %v333, %v331
    %v512 = vpack.c.b16 %v334, %v332
    %v513 = vpack.c.b16 %v337, %v335
    %v514 = vpack.c.b16 %v338, %v336
    %v515 = vpack.c.b16 %v341, %v339
    %v516 = vpack.c.b16 %v342, %v340
    %v517 = vpack.c.b16 %v345, %v343
    %v518 = vpack.c.b16 %v346, %v344
    %v519 = vpack.c.b16 %v349, %v347
    %v520 = vpack.c.b16 %v350, %v348
    %v521 = vpack.c.b16 %v353, %v351
    %v522 = vpack.c.b16 %v354, %v352
    %v523 = vpack.c.b16 %v357, %v355
    %v524 = vpack.c.b16 %v358, %v356
    %v525 = vpack.c.b16 %v361, %v359
    %v526 = vpack.c.b16 %v362, %v360
    %v527 = vpack.c.b16 %v365, %v363
    %v528 = vpack.c.b16 %v366, %v364
    %v529 = vpack.c.b16 %v369, %v367
    %v530 = vpack.c.b16 %v370, %v368
    %v531 = vpack.c.b16 %v373, %v371
    %v532 = vpack.c.b16 %v374, %v372
    %v533 = vpack.c.b16 %v377, %v375
    %v534 = vpack.c.b16 %v378, %v376
    %v535 = vpack.c.b16 %v381, %v379
    %v536 = vpack.c.b16 %v382, %v380
    %v537 = vpack.c.b16 %v385, %v383
    %v538 = vpack.c.b16 %v386, %v384
    %v539 = vpack.c.b16 %v389, %v387
    %v540 = vpack.c.b16 %v390, %v388
    %v541 = vpack.c.b16 %v393, %v391
    %v542 = vpack.c.b16 %v394, %v392
    %v543 = vpack.c.b16 %v397, %v395
    %v544 = vpack.c.b16 %v398, %v396
    %v545 = vpack.c.b16 %v401, %v399
    %v546 = vpack.c.b16 %v402, %v400
    %v547 = vpack.c.b16 %v405, %v403
    %v548 = vpack.c.b16 %v406, %v404
    %v549 = vpack.c.b16 %v409, %v407
    %v550 = vpack.c.b16 %v410, %v408
    %v551 = vpack.c.b16 %v413, %v411
    %v552 = vpack.c.b16 %v414, %v412
    %v553 = vpack.c.b16 %v417, %v415
    %v554 = vpack.c.b16 %v418, %v416
    %v555 = vpack.c.b16 %v421, %v419
    %v556 = vpack.c.b16 %v422, %v420
    %v557 = vpack.c.b16 %v425, %v423
    %v558 = vpack.c.b16 %v426, %v424
    %v559 = vpack.c.b16 %v429, %v427
    %v560 = vpack.c.b16 %v430, %v428
    %v561 = vpack.c.b16 %v433, %v431
    %v562 = vpack.c.b16 %v434, %v432
    %v563 = vpack.c.b16 %v437, %v435
    %v564 = vpack.c.b16 %v438, %v436
    %v565 = vpack.c.b16 %v441, %v439
    %v566 = vpack.c.b16 %v442, %v440
    %v567 = vpack.c.b16 %v445, %v443
    %v568 = vpack.c.b16 %v446, %v444
    %v569 = vpack.c.b16 %v449, %v447
    %v570 = vpack.c.b16 %v450, %v448
    %v571 = vpack.c.b16 %v453, %v451
    %v572 = vpack.c.b16 %v454, %v452
    %v573 = vpack.c.b16 %v457, %v455
    %v574 = vpack.c.b16 %v458, %v456
    %v575 = vpack.c.b16 %v461, %v459
    %v576 = vpack.c.b16 %v462, %v460
    %v577 = vpack.c.b16 %v465, %v463
    %v578 = vpack.c.b16 %v466, %v464
    %v579 = vpack.c.b16 %v469, %v467
    %v580 = vpack.c.b16 %v470, %v468
    %v581 = vpack.c.b16 %v473, %v471
    %v582 = vpack.c.b16 %v474, %v472
    %v583 = vpack.c.b16 %v477, %v475
    %v584 = vpack.c.b16 %v478, %v476
    %v585 = vpack.c.b16 %v481, %v479
    %v586 = vpack.c.b16 %v482, %v480
    %v587 = vpack.c.b16 %v485, %v483
    %v588 = vpack.c.b16 %v486, %v484
    %v589 = vpack.c.b16 %v489, %v487
    %v590 = vpack.c.b16 %v490, %v488
    %v591 = vpack.c.b16 %v493, %v491
    %v592 = vpack.c.b16 %v494, %v492
    %v593 = vpack.c.b16 %v497, %v495
    %v594 = vpack.c.b16 %v498, %v496
    %691 = vmatpush.bf16.msra.mxu0 %v513
    %692 = vmatpush.bf16.msra.mxu0 %v511
    %693 = vmatpush.bf16.msra.mxu0 %v509
    %694 = vmatpush.bf16.msra.mxu0 %v507
    %695 = vmatpush.bf16.msra.mxu0 %v505
    %696 = vmatpush.bf16.msra.mxu0 %v503
    %697 = vmatpush.bf16.msra.mxu0 %v501
    %698 = vmatpush.bf16.msra.mxu0 %v499
    %699 = vmatmul.bf16.gmra.mxu0 %v199
    %v700 = vpop.f32.mrf.mxu0
    %v701 = vadd.f32 %v184, %v700
    %v702 = vpop.f32.mrf.mxu0
    %703 = vdwg.mxu0
    %704 = vmatpush.bf16.msra.mxu0 %v529
    %705 = vmatpush.bf16.msra.mxu0 %v527
    %706 = vmatpush.bf16.msra.mxu0 %v525
    %707 = vmatpush.bf16.msra.mxu0 %v523
    %708 = vmatpush.bf16.msra.mxu0 %v521
    %709 = vmatpush.bf16.msra.mxu0 %v519
    %710 = vmatpush.bf16.msra.mxu0 %v517
    %711 = vmatpush.bf16.msra.mxu0 %v515
    %712 = vmatmul.bf16.gmra.mxu0 %v200
    %v713 = vpop.f32.mrf.mxu0
    %v714 = vadd.f32 %v701, %v713
    %v715 = vpop.f32.mrf.mxu0
    %716 = vdwg.mxu0
    %717 = vmatpush.bf16.msra.mxu0 %v545
    %718 = vmatpush.bf16.msra.mxu0 %v543
    %719 = vmatpush.bf16.msra.mxu0 %v541
    %720 = vmatpush.bf16.msra.mxu0 %v539
    %721 = vmatpush.bf16.msra.mxu0 %v537
    %722 = vmatpush.bf16.msra.mxu0 %v535
    %723 = vmatpush.bf16.msra.mxu0 %v533
    %724 = vmatpush.bf16.msra.mxu0 %v531
    %725 = vmatmul.bf16.gmra.mxu0 %v201
    %v726 = vpop.f32.mrf.mxu0
    %v727 = vadd.f32 %v714, %v726
    %v728 = vpop.f32.mrf.mxu0
    %729 = vdwg.mxu0
    %730 = vmatpush.bf16.msra.mxu0 %v561
    %731 = vmatpush.bf16.msra.mxu0 %v559
    %732 = vmatpush.bf16.msra.mxu0 %v557
    %733 = vmatpush.bf16.msra.mxu0 %v555
    %734 = vmatpush.bf16.msra.mxu0 %v553
    %735 = vmatpush.bf16.msra.mxu0 %v551
    %736 = vmatpush.bf16.msra.mxu0 %v549
    %737 = vmatpush.bf16.msra.mxu0 %v547
    %738 = vmatmul.bf16.gmra.mxu0 %v202
    %v739 = vpop.f32.mrf.mxu0
    %v740 = vadd.f32 %v727, %v739
    %v741 = vpop.f32.mrf.mxu0
    %742 = vdwg.mxu0
    %743 = vmatpush.bf16.msra.mxu0 %v577
    %744 = vmatpush.bf16.msra.mxu0 %v575
    %745 = vmatpush.bf16.msra.mxu0 %v573
    %746 = vmatpush.bf16.msra.mxu0 %v571
    %747 = vmatpush.bf16.msra.mxu0 %v569
    %748 = vmatpush.bf16.msra.mxu0 %v567
    %749 = vmatpush.bf16.msra.mxu0 %v565
    %750 = vmatpush.bf16.msra.mxu0 %v563
    %751 = vmatmul.bf16.gmra.mxu0 %v203
    %v752 = vpop.f32.mrf.mxu0
    %v753 = vadd.f32 %v740, %v752
    %v754 = vpop.f32.mrf.mxu0
    %755 = vdwg.mxu0
    %756 = vmatpush.bf16.msra.mxu0 %v593
    %757 = vmatpush.bf16.msra.mxu0 %v591
    %758 = vmatpush.bf16.msra.mxu0 %v589
    %759 = vmatpush.bf16.msra.mxu0 %v587
    %760 = vmatpush.bf16.msra.mxu0 %v585
    %761 = vmatpush.bf16.msra.mxu0 %v583
    %762 = vmatpush.bf16.msra.mxu0 %v581
    %763 = vmatpush.bf16.msra.mxu0 %v579
    %764 = vmatmul.bf16.gmra.mxu0 %v204
    %v765 = vpop.f32.mrf.mxu0
    %v766 = vadd.f32 %v753, %v765
    %v767 = vpop.f32.mrf.mxu0
    %768 = vdwg.mxu0
    %769 = vmatpush.bf16.msra.mxu0 %v514
    %770 = vmatpush.bf16.msra.mxu0 %v512
    %771 = vmatpush.bf16.msra.mxu0 %v510
    %772 = vmatpush.bf16.msra.mxu0 %v508
    %773 = vmatpush.bf16.msra.mxu0 %v506
    %774 = vmatpush.bf16.msra.mxu0 %v504
    %775 = vmatpush.bf16.msra.mxu0 %v502
    %776 = vmatpush.bf16.msra.mxu0 %v500
    %777 = vmatmul.bf16.gmra.mxu0 %v199
    %v778 = vpop.f32.mrf.mxu0
    %v779 = vadd.f32 %v185, %v778
    %v780 = vpop.f32.mrf.mxu0
    %781 = vdwg.mxu0
    %782 = vmatpush.bf16.msra.mxu0 %v530
    %783 = vmatpush.bf16.msra.mxu0 %v528
    %784 = vmatpush.bf16.msra.mxu0 %v526
    %785 = vmatpush.bf16.msra.mxu0 %v524
    %786 = vmatpush.bf16.msra.mxu0 %v522
    %787 = vmatpush.bf16.msra.mxu0 %v520
    %788 = vmatpush.bf16.msra.mxu0 %v518
    %789 = vmatpush.bf16.msra.mxu0 %v516
    %790 = vmatmul.bf16.gmra.mxu0 %v200
    %v791 = vpop.f32.mrf.mxu0
    %v792 = vadd.f32 %v779, %v791
    %v793 = vpop.f32.mrf.mxu0
    %794 = vdwg.mxu0
    %795 = vmatpush.bf16.msra.mxu0 %v546
    %796 = vmatpush.bf16.msra.mxu0 %v544
    %797 = vmatpush.bf16.msra.mxu0 %v542
    %798 = vmatpush.bf16.msra.mxu0 %v540
    %799 = vmatpush.bf16.msra.mxu0 %v538
    %800 = vmatpush.bf16.msra.mxu0 %v536
    %801 = vmatpush.bf16.msra.mxu0 %v534
    %802 = vmatpush.bf16.msra.mxu0 %v532
    %803 = vmatmul.bf16.gmra.mxu0 %v201
    %v804 = vpop.f32.mrf.mxu0
    %v805 = vadd.f32 %v792, %v804
    %v806 = vpop.f32.mrf.mxu0
    %807 = vdwg.mxu0
    %808 = vmatpush.bf16.msra.mxu0 %v562
    %809 = vmatpush.bf16.msra.mxu0 %v560
    %810 = vmatpush.bf16.msra.mxu0 %v558
    %811 = vmatpush.bf16.msra.mxu0 %v556
    %812 = vmatpush.bf16.msra.mxu0 %v554
    %813 = vmatpush.bf16.msra.mxu0 %v552
    %814 = vmatpush.bf16.msra.mxu0 %v550
    %815 = vmatpush.bf16.msra.mxu0 %v548
    %816 = vmatmul.bf16.gmra.mxu0 %v202
    %v817 = vpop.f32.mrf.mxu0
    %v818 = vadd.f32 %v805, %v817
    %v819 = vpop.f32.mrf.mxu0
    %820 = vdwg.mxu0
    %821 = vmatpush.bf16.msra.mxu0 %v578
    %822 = vmatpush.bf16.msra.mxu0 %v576
    %823 = vmatpush.bf16.msra.mxu0 %v574
    %824 = vmatpush.bf16.msra.mxu0 %v572
    %825 = vmatpush.bf16.msra.mxu0 %v570
    %826 = vmatpush.bf16.msra.mxu0 %v568
    %827 = vmatpush.bf16.msra.mxu0 %v566
    %828 = vmatpush.bf16.msra.mxu0 %v564
    %829 = vmatmul.bf16.gmra.mxu0 %v203
    %v830 = vpop.f32.mrf.mxu0
    %v831 = vadd.f32 %v818, %v830
    %v832 = vpop.f32.mrf.mxu0
    %833 = vdwg.mxu0
    %834 = vmatpush.bf16.msra.mxu0 %v594
    %835 = vmatpush.bf16.msra.mxu0 %v592
    %836 = vmatpush.bf16.msra.mxu0 %v590
    %837 = vmatpush.bf16.msra.mxu0 %v588
    %838 = vmatpush.bf16.msra.mxu0 %v586
    %839 = vmatpush.bf16.msra.mxu0 %v584
    %840 = vmatpush.bf16.msra.mxu0 %v582
    %841 = vmatpush.bf16.msra.mxu0 %v580
    %842 = vmatmul.bf16.gmra.mxu0 %v204
    %v843 = vpop.f32.mrf.mxu0
    %v844 = vadd.f32 %v831, %v843
    %v845 = vpop.f32.mrf.mxu0
    %846 = vdwg.mxu0
    %v847 = vmax.f32 %v766, 0.0
    %v848 = vmax.f32 %v844, 0.0
    %v849 = vpack.c.bf16 %v847, %v847
    %v850 = vpack.c.bf16 %v848, %v848
    %v851 = vld [vmem:[#allocation8] sm:$0xf]
    %v852 = vld [vmem:[#allocation8 + $0x4] sm:$0xf]
    %v853 = vld [vmem:[#allocation8 + $0x8] sm:$0xf]
    %v854 = vld [vmem:[#allocation8 + $0xc] sm:$0xf]
    %v855 = vld [vmem:[#allocation8 + $0x10] sm:$0xf]
    %v856 = vld [vmem:[#allocation8 + $0x14] sm:$0xf]
    %v857 = vld [vmem:[#allocation8 + $0x18] sm:$0xf]
    %v858 = vld [vmem:[#allocation8 + $0x1c] sm:$0xf]
    %v859 = vld [vmem:[#allocation8 + $0x20] sm:$0xf]
    %v860 = vld [vmem:[#allocation8 + $0x24] sm:$0xf]
    %v861 = vld [vmem:[#allocation8 + $0x28] sm:$0xf]
    %v862 = vld [vmem:[#allocation8 + $0x2c] sm:$0xf]
    %v863 = vld [vmem:[#allocation8 + $0x30] sm:$0xf]
    %v864 = vld [vmem:[#allocation8 + $0x34] sm:$0xf]
    %v865 = vld [vmem:[#allocation8 + $0x38] sm:$0xf]
    %v866 = vld [vmem:[#allocation8 + $0x3c] sm:$0xf]
    %v867 = vld [vmem:[#allocation8 + $0x40] sm:$0xf]
    %v868 = vld [vmem:[#allocation8 + $0x44] sm:$0xf]
    %v869 = vld [vmem:[#allocation8 + $0x48] sm:$0xf]
    %v870 = vld [vmem:[#allocation8 + $0x4c] sm:$0xf]
    %v871 = vld [vmem:[#allocation8 + $0x50] sm:$0xf]
    %v872 = vld [vmem:[#allocation8 + $0x54] sm:$0xf]
    %v873 = vld [vmem:[#allocation8 + $0x58] sm:$0xf]
    %v874 = vld [vmem:[#allocation8 + $0x5c] sm:$0xf]
    %v875 = vld [vmem:[#allocation8 + $0x60] sm:$0xf]
    %v876 = vld [vmem:[#allocation8 + $0x64] sm:$0xf]
    %v877 = vld [vmem:[#allocation8 + $0x68] sm:$0xf]
    %v878 = vld [vmem:[#allocation8 + $0x6c] sm:$0xf]
    %v879 = vld [vmem:[#allocation8 + $0x70] sm:$0xf]
    %v880 = vld [vmem:[#allocation8 + $0x74] sm:$0xf]
    %v881 = vld [vmem:[#allocation8 + $0x78] sm:$0xf]
    %v882 = vld [vmem:[#allocation8 + $0x7c] sm:$0xf]
    %v883 = vld [vmem:[%s4] sm:$0x1]
    %v885 = vperm.slane %v883, 0
    %v919 = vunpack.c.l.b16 %v851
    %v920 = vunpack.c.l.b16 %v852
    %v921 = vunpack.c.l.b16 %v853
    %v922 = vunpack.c.l.b16 %v854
    %v923 = vunpack.c.l.b16 %v855
    %v924 = vunpack.c.l.b16 %v856
    %v925 = vunpack.c.l.b16 %v857
    %v926 = vunpack.c.l.b16 %v858
    %v927 = vunpack.c.l.b16 %v859
    %v928 = vunpack.c.l.b16 %v860
    %v929 = vunpack.c.l.b16 %v861
    %v930 = vunpack.c.l.b16 %v862
    %v931 = vunpack.c.l.b16 %v863
    %v932 = vunpack.c.l.b16 %v864
    %v933 = vunpack.c.l.b16 %v865
    %v934 = vunpack.c.l.b16 %v866
    %v935 = vunpack.c.l.b16 %v867
    %v936 = vunpack.c.l.b16 %v868
    %v937 = vunpack.c.l.b16 %v869
    %v938 = vunpack.c.l.b16 %v870
    %v939 = vunpack.c.l.b16 %v871
    %v940 = vunpack.c.l.b16 %v872
    %v941 = vunpack.c.l.b16 %v873
    %v942 = vunpack.c.l.b16 %v874
    %v943 = vunpack.c.l.b16 %v875
    %v944 = vunpack.c.l.b16 %v876
    %v945 = vunpack.c.l.b16 %v877
    %v946 = vunpack.c.l.b16 %v878
    %v947 = vunpack.c.l.b16 %v879
    %v948 = vunpack.c.l.b16 %v880
    %v949 = vunpack.c.l.b16 %v881
    %v950 = vunpack.c.l.b16 %v882
    %v951 = vpack.c.b16 %v920, %v919
    %v952 = vpack.c.b16 %v922, %v921
    %v953 = vpack.c.b16 %v924, %v923
    %v954 = vpack.c.b16 %v926, %v925
    %v955 = vpack.c.b16 %v928, %v927
    %v956 = vpack.c.b16 %v930, %v929
    %v957 = vpack.c.b16 %v932, %v931
    %v958 = vpack.c.b16 %v934, %v933
    %v959 = vpack.c.b16 %v936, %v935
    %v960 = vpack.c.b16 %v938, %v937
    %v961 = vpack.c.b16 %v940, %v939
    %v962 = vpack.c.b16 %v942, %v941
    %v963 = vpack.c.b16 %v944, %v943
    %v964 = vpack.c.b16 %v946, %v945
    %v965 = vpack.c.b16 %v948, %v947
    %v966 = vpack.c.b16 %v950, %v949
    %983 = vmatpush.bf16.msra.mxu0 %v958
    %984 = vmatpush.bf16.msra.mxu0 %v957
    %985 = vmatpush.bf16.msra.mxu0 %v956
    %986 = vmatpush.bf16.msra.mxu0 %v955
    %987 = vmatpush.bf16.msra.mxu0 %v954
    %988 = vmatpush.bf16.msra.mxu0 %v953
    %989 = vmatpush.bf16.msra.mxu0 %v952
    %990 = vmatpush.bf16.msra.mxu0 %v951
    %991 = vmatmul.bf16.gmra.mxu0 %v849
    %v992 = vpop.f32.mrf.mxu0
    %v993 = vadd.f32 %v885, %v992
    %v994 = vpop.f32.mrf.mxu0
    %995 = vdwg.mxu0
    %996 = vmatpush.bf16.msra.mxu0 %v966
    %997 = vmatpush.bf16.msra.mxu0 %v965
    %998 = vmatpush.bf16.msra.mxu0 %v964
    %999 = vmatpush.bf16.msra.mxu0 %v963
    %1000 = vmatpush.bf16.msra.mxu0 %v962
    %1001 = vmatpush.bf16.msra.mxu0 %v961
    %1002 = vmatpush.bf16.msra.mxu0 %v960
    %1003 = vmatpush.bf16.msra.mxu0 %v959
    %1004 = vmatmul.bf16.gmra.mxu0 %v850
    %v1005 = vpop.f32.mrf.mxu0
    %v1006 = vadd.f32 %v993, %v1005
    %v1007 = vpop.f32.mrf.mxu0
    %1008 = vdwg.mxu0
    %1009 = vmax.xlane.f32.xlu0 %v1006
    %v1010 = vpop.xlane.xlu0 %1009
    %v1011 = vsub.f32 %v1006, %v1010
    %v1012 = vmul.f32 %v1011, 1.442695
    %v1013 = vpow.pop %v1012
    %1014 = vadd.xlane.f32.xlu0 %v1013
    %v1015 = vpop.xlane.xlu0 %1014
    %v1016 = vrcp.pop %v1015
    %v1017 = vmul.f32 %v1015, %v1016
    %v1018 = vsub.f32 1.0, %v1017
    %v1019 = vmul.f32 %v1016, %v1018
    %v1020 = vadd.f32 %v1016, %v1019
    %vm1021 = vweird.f32 %v1015
    %vm1022 = vweird.f32 %v1016
    %vm1023 = vmor %vm1021, %vm1022
    %v1024 = vsel %vm1023, %v1016, %v1020
    %v1025 = vand.u32 2147483647, %v1015
    %vm1026 = vcmp.eq.f32.partialorder %v1025, 8.507059e+37
    %v1027 = vand.u32 %v1015, 2147483648
    %v1028 = vor.u32 1.1754944e-38, %v1027
    %v1029 = vsel %vm1026, %v1028, %v1024
    %v1030 = vmul.f32 %v1013, %v1029
    %v1031 = vpack.c.bf16 %v1030, %v1030
    %v1033 = vrot.slane %v1031, 3
    %vm1034 = vcmask 1040384
    %v1037 = vsel %vm1034, %v1031, %v1033
    %vm1038 = vcmask 1041409
    %v1039 = vsel %vm1038, %v1031, %v1033
    %v1041 = vrot.slane %v1039, 1
    %vm1042 = vcmask 1042434
    %v1043 = vsel %vm1042, %v1031, %v1033
    %v1045 = vrot.slane %v1043, 2
    %vm1046 = vcmask 1043459
    %v1047 = vsel %vm1046, %v1031, %v1033
    %v1049 = vrot.slane %v1047, 3
    %1054 = vst [vmem:[#allocation10] sm:$0x1] %v1037
    %1055 = vst [vmem:[#allocation10 + $0x1] sm:$0x1] %v1041
    %1056 = vst [vmem:[#allocation10 + $0x2] sm:$0x1] %v1045
    %1057 = vst [vmem:[#allocation10 + $0x3] sm:$0x1] %v1049
    // Predicated region
    $region38: #{tpu_custom_call.1} parent=1 // pred_check
      _
    $region39: #{tpu_custom_call.1} parent=1 // pred_check_branch
      %1059 = sbr.rel (0) target = $region41
    $region40: #{tpu_custom_call.1} parent=1 // pred_region
      %1061 = vsyncadd [#allocation4], 48
      %s1062 = sshll.u32 [#allocation10], 4
      %s1063 = int_to_ptr.vmem [resolvable:$true] %s1062
      %s1064 = sshll.u32 %s5, 4
      %s1065 = int_to_ptr.hbm [resolvable:$true] %s1064
      %1070 = dma.vmem_to_hbm [thread:$0]  %s1063, 16, %s1065, [#allocation4], 16, 16, 1
    $region41: #{tpu_custom_call.1} parent=1 // pred_fallthru
      _
    // Predicated region
    $region42: #{tpu_custom_call.1} parent=1 // pred_check
      _
    $region43: #{tpu_custom_call.1} parent=1 // pred_check_branch
      %1072 = sbr.rel (0) target = $region45
    $region44: #{tpu_custom_call.1} parent=1 // pred_region
      %1074 = dma.done [#allocation4], 64
    $region45: #{tpu_custom_call.1} parent=1 // pred_fallthru
      _
    %1075 = vsyncpa [#allocation3], 1
    %1076 = vsyncpa [#allocation6], 1
    %1077 = vsyncpa [#allocation9], 1
    %1078 = vsyncpa [#allocation4], 1

</llo_original>
